<compile_context>
chip_gen: v7x
topology: tpu7x:2x2x1
jax: 0.10.0
libtpu: 0.0.40
codegen_flags: <defaults>
</compile_context>

<pallas_src>
import functools

import jax
import jax.numpy as jnp
from jax import lax
from jax.experimental import pallas as pl
from jax.experimental.pallas import tpu as pltpu


def _dropout_kernel(seed_ref, x_ref, o_ref, *, threshold: int, scale: float):
    r, c = x_ref.shape
    blk = pl.program_id(0)

    # Global element index of each lane in this block (wraparound past 2^31 is
    # harmless: only the low 32 bits feed the hash).
    row = lax.broadcasted_iota(jnp.int32, (r, c), 0)
    col = lax.broadcasted_iota(jnp.int32, (r, c), 1)
    idx = (blk * r + row) * c + col

    # Stateless counter-based hash (splitmix32-style) -> 32 uniform bits/elem.
    z = idx.astype(jnp.uint32) * jnp.uint32(0x9E3779B9) + seed_ref[0].astype(jnp.uint32)
    z = z ^ (z >> 16)
    z = z * jnp.uint32(0x21F0AAAD)
    z = z ^ (z >> 15)
    z = z * jnp.uint32(0x735A2D97)
    z = z ^ (z >> 15)

    keep = z >= jnp.uint32(threshold)          # P(drop) = threshold / 2^32 ~= p
    x = x_ref[...]
    scaled = x * jnp.asarray(scale, dtype=x.dtype)
    o_ref[...] = jnp.where(keep, scaled, jnp.zeros_like(scaled)).astype(o_ref.dtype)


def sample_dropout_augmentation(x, seed: int = 0, p: float = 1e-4, training: bool = True):
    """JAX/Pallas equivalent of SampleDropoutAugmentation.forward(x)."""
    if not training or p <= 0.0:
        return x
    if p >= 1.0:
        return jnp.zeros_like(x)

    orig_shape = x.shape
    orig_dtype = x.dtype
    n = x.size
    itemsize = jnp.dtype(orig_dtype).itemsize

    # Widest lane-dense slab width that divides n -> no padding copy needed.
    lane_w = next((w for w in (4096, 2048, 1024, 512, 256, 128) if n % w == 0), None)
    if lane_w is None:
        # TODO(synk): rare ragged sizes take one pad copy + final slice; could
        # be replaced by an in-kernel masked tail store instead.
        lane_w = 128
        n_pad = pl.cdiv(n, lane_w) * lane_w
        flat = jnp.pad(x.reshape(-1), (0, n_pad - n))
    else:
        n_pad = n
        flat = x.reshape(-1)

    rows = n_pad // lane_w
    # Sublane packing factor: 8 rows (32-bit), 16 (bf16), 32 (int8).
    pack = 8 * max(1, 4 // itemsize)
    # ~1 MiB block (~85% of HBM roofline); x4 double-buffered in+out plus
    # in-kernel temporaries fits the default scoped VMEM on all generations.
    target_rows = max(pack, (1 << 20) // (lane_w * itemsize) // pack * pack)
    block_rows = min(target_rows, rows)        # == rows (full dim) if rows is small
    grid = (pl.cdiv(rows, block_rows),)

    slab = flat.reshape(rows, lane_w)
    seed_arr = jnp.asarray([seed], dtype=jnp.int32)

    threshold = min(int(round(p * 2 ** 32)), 2 ** 32 - 1)
    scale = 1.0 / (1.0 - p)

    out = pl.pallas_call(
        functools.partial(_dropout_kernel, threshold=threshold, scale=scale),
        out_shape=jax.ShapeDtypeStruct((rows, lane_w), orig_dtype),
        grid_spec=pltpu.PrefetchScalarGridSpec(
            num_scalar_prefetch=1,
            grid=grid,
            in_specs=[pl.BlockSpec((block_rows, lane_w), lambda i, seed_ref: (i, 0))],
            out_specs=pl.BlockSpec((block_rows, lane_w), lambda i, seed_ref: (i, 0)),
        ),
        compiler_params=pltpu.CompilerParams(
            # Every block is independent -> shard across both v7x TensorCores.
            dimension_semantics=("parallel",),
        ),
        cost_estimate=pl.CostEstimate(
            flops=n, transcendentals=0, bytes_accessed=2 * n * itemsize),
    )(seed_arr, slab)

    if n_pad != n:
        return out.reshape(-1)[:n].reshape(orig_shape)
    return out.reshape(orig_shape)


if __name__ == "__main__":
    key = jax.random.PRNGKey(0)
    x = jax.random.normal(key, (2, 4, 16, 16), dtype=jnp.float32)  # NCHW

    p = 1e-4
    y = sample_dropout_augmentation(x, seed=0, p=p, training=True)
    y = jax.block_until_ready(y)

    assert y.shape == x.shape and y.dtype == x.dtype

    # Sanity: surviving elements equal x / (1 - p); dropped ones are exactly 0.
    # (Normal inputs: exact zeros in x have ~0 probability, so y != 0 is a
    # reliable keep-mask here.)
    scale = 1.0 / (1.0 - p)
    kept = y != 0
    assert bool(jnp.allclose(jnp.where(kept, y, x * scale), x * scale, rtol=1e-6, atol=1e-6))
    # With p = 1e-4 over 2048 elements, (almost) everything is kept.
    assert int(jnp.sum(kept)) >= int(0.99 * x.size)
    # Deterministic for a fixed seed.
    y2 = jax.block_until_ready(sample_dropout_augmentation(x, seed=0, p=p, training=True))
    assert bool(jnp.array_equal(y, y2))

    print("KERNEL_OK")
</pallas_src>

<mosaic_0001>
module attributes {stable_mosaic.version = 11 : i64} {
  func.func @_dropout_kernel(%arg0: i32, %arg1: memref<1xi32, #tpu.memory_space<smem>>, %arg2: memref<1x2048xf32, #tpu.memory_space<vmem>>, %arg3: memref<1x2048xf32, #tpu.memory_space<vmem>>) attributes {dimension_semantics = [#tpu.dimension_semantics<parallel>], iteration_bounds = array<i64: 1>, scalar_prefetch = 1 : i64, scratch_operands = 0 : i64, tpu.core_type = #tpu.core_type<tc>, window_params = [{transform_indices = @transform_0, window_bounds = array<i64: 1, 2048>}, {transform_indices = @transform_1, window_bounds = array<i64: 1, 2048>}]} {
    %0 = tpu.iota {dimensions = array<i32: 0>} : vector<1x2048xi32>
    %1 = tpu.iota {dimensions = array<i32: 1>} : vector<1x2048xi32>
    %c1_i32 = arith.constant 1 : i32
    %2 = arith.muli %arg0, %c1_i32 : i32
    %3 = vector.broadcast %2 : i32 to vector<1x2048xi32>
    %4 = arith.addi %3, %0 : vector<1x2048xi32>
    %c2048_i32 = arith.constant 2048 : i32
    %5 = vector.broadcast %c2048_i32 : i32 to vector<1x2048xi32>
    %6 = arith.muli %4, %5 : vector<1x2048xi32>
    %7 = arith.addi %6, %1 : vector<1x2048xi32>
    %c-1640531527_i32 = arith.constant -1640531527 : i32
    %8 = vector.broadcast %c-1640531527_i32 : i32 to vector<1x2048xi32>
    %9 = arith.muli %7, %8 : vector<1x2048xi32>
    %c0 = arith.constant 0 : index
    %10 = memref.load %arg1[%c0] : memref<1xi32, #tpu.memory_space<smem>>
    %11 = vector.broadcast %10 : i32 to vector<1x2048xi32>
    %12 = arith.addi %9, %11 : vector<1x2048xi32>
    %c16_i32 = arith.constant 16 : i32
    %13 = vector.broadcast %c16_i32 : i32 to vector<1x2048xi32>
    %14 = arith.shrui %12, %13 : vector<1x2048xi32>
    %15 = arith.xori %12, %14 : vector<1x2048xi32>
    %c569420461_i32 = arith.constant 569420461 : i32
    %16 = vector.broadcast %c569420461_i32 : i32 to vector<1x2048xi32>
    %17 = arith.muli %15, %16 : vector<1x2048xi32>
    %c15_i32 = arith.constant 15 : i32
    %18 = vector.broadcast %c15_i32 : i32 to vector<1x2048xi32>
    %19 = arith.shrui %17, %18 : vector<1x2048xi32>
    %20 = arith.xori %17, %19 : vector<1x2048xi32>
    %c1935289751_i32 = arith.constant 1935289751 : i32
    %21 = vector.broadcast %c1935289751_i32 : i32 to vector<1x2048xi32>
    %22 = arith.muli %20, %21 : vector<1x2048xi32>
    %c15_i32_0 = arith.constant 15 : i32
    %23 = vector.broadcast %c15_i32_0 : i32 to vector<1x2048xi32>
    %24 = arith.shrui %22, %23 : vector<1x2048xi32>
    %25 = arith.xori %22, %24 : vector<1x2048xi32>
    %c429497_i32 = arith.constant 429497 : i32
    %26 = vector.broadcast %c429497_i32 : i32 to vector<1x2048xi32>
    %27 = arith.cmpi uge, %25, %26 : vector<1x2048xi32>
    %c0_1 = arith.constant 0 : index
    %c0_2 = arith.constant 0 : index
    %28 = vector.load %arg2[%c0_1, %c0_2] : memref<1x2048xf32, #tpu.memory_space<vmem>>, vector<1x2048xf32>
    %cst = arith.constant 1.000100e+00 : f32
    %29 = vector.broadcast %cst : f32 to vector<1x2048xf32>
    %30 = arith.mulf %28, %29 : vector<1x2048xf32>
    %cst_3 = arith.constant 0.000000e+00 : f32
    %31 = vector.broadcast %cst_3 : f32 to vector<1x2048xf32>
    %32 = arith.select %27, %30, %31 : vector<1x2048xi1>, vector<1x2048xf32>
    %c0_4 = arith.constant 0 : index
    %c0_5 = arith.constant 0 : index
    %33 = vector.load %arg3[%c0_4, %c0_5] : memref<1x2048xf32, #tpu.memory_space<vmem>>, vector<1x2048xf32>
    tpu.vector_store %arg3[%c0_4, %c0_5], %32 {strides = array<i32>} : memref<1x2048xf32, #tpu.memory_space<vmem>>, vector<1x2048xf32>,
    return
  }
  func.func @transform_0(%arg0: i32, %arg1: memref<1xi32, #tpu.memory_space<smem>>) -> (i32, i32) {
    %c0_i32 = arith.constant 0 : i32
    %c0_i32_0 = arith.constant 0 : i32
    return %arg0, %c0_i32 : i32, i32
  }
  func.func @transform_1(%arg0: i32, %arg1: memref<1xi32, #tpu.memory_space<smem>>) -> (i32, i32) {
    %c0_i32 = arith.constant 0 : i32
    %c0_i32_0 = arith.constant 0 : i32
    return %arg0, %c0_i32 : i32, i32
  }
}

</mosaic_0001>

<llo_original>
// kernel: tpu_custom_call.1
$region0: #{tpu_custom_call.1}
  #allocation0 [shape = 'u32[]', space=smem, size = 0x4, offset = 0x4, fixed_abs, tag = 'smem constant byte address 0x4 - core index']
  #allocation1 [shape = 'u32[144,128]{1,0:T(1,128)}', space=vmem, size = 0x12000, scoped, tag = 'internal scratch']
  #allocation2 [shape = 's32[1]{0}', space=sflag, size = 0x4, scoped, tag = 'scoped memory for tpu_custom_call.1']
  #allocation3 [shape = 's32[1]{0:T(128)S(6)}', space=smem, size = 0x200, scoped, tag = 'prefetched SMEM operand 0']
  %s0 = inlined_call_operand.<no memory space> [shape: s32[1], index: 0, kind: input, shape index: {}]
  %s1 = inlined_call_operand.hbm [shape: f32[1,2048], index: 1, kind: input, shape index: {}]
  %s2 = inlined_call_operand.hbm [shape: f32[1,2048], index: 2, kind: output, shape index: {}]
  %s3 = sld [smem:[#allocation0]]
  $region18: #{tpu_custom_call.1} parent=0
    _
  %s5 = ssub.s32 1, %s3
  %s6 = scalar_select 0, %s5, %s3
  %7 = sst [smem:[#allocation3]] %s0
  $region1: #{tpu_custom_call.1} parent=0
    #allocation4 [shape = 'u8[8192]{0}', space=vmem, size = 0x2000, scoped, tag = 'input window, operand 1, single buffered']
    #allocation5 [shape = 's32[1]{0}', space=sflag, size = 0x4, scoped, tag = 'scoped memory for tpu_custom_call.1']
    #allocation6 [shape = 's32[1]{0}', space=sflag, size = 0x4, scoped, tag = 'scoped memory for tpu_custom_call.1']
    #allocation7 [shape = 'u8[8192]{0}', space=vmem, size = 0x2000, scoped, tag = 'output window, operand 0, single buffered']
    %8 = vsyncpa [#allocation5], 0
    %9 = vsyncpa [#allocation6], 0
    // Predicated region
    $region2: #{tpu_custom_call.1} parent=1 // pred_check
      _
    $region3: #{tpu_custom_call.1} parent=1 // pred_check_branch
      %11 = sbr.rel (0) target = $region5
    $region4: #{tpu_custom_call.1} parent=1 // pred_region
      %s13 = ssub.s32 256, 256
      %14 = vsyncadd [#allocation5], %s13
      %s16 = sshll.u32 [#allocation4], 4
      %s17 = int_to_ptr.vmem [resolvable:$true] %s16
      %19 = dma.hbm_to_vmem [thread:$0]  %s1, 256, %s17, [#allocation5]
    $region5: #{tpu_custom_call.1} parent=1 // pred_fallthru
      _
    // Predicated region
    $region6: #{tpu_custom_call.1} parent=1 // pred_check
      _
    $region7: #{tpu_custom_call.1} parent=1 // pred_check_branch
      %21 = sbr.rel (0) target = $region9
    $region8: #{tpu_custom_call.1} parent=1 // pred_region
      %22 = dma.done [#allocation5], 256
    $region9: #{tpu_custom_call.1} parent=1 // pred_fallthru
      _
    %v23 = vlaneseq
    %v24 = vshrl.u32 %v23, 7
    %v25 = vlaneseq
    %v26 = vand.u32 %v25, 127
    %v27 = vadd.s32 %v26, 128
    %v28 = vadd.s32 %v26, 256
    %v29 = vadd.s32 %v26, 384
    %v30 = vadd.s32 %v26, 512
    %v31 = vadd.s32 %v26, 640
    %v32 = vadd.s32 %v26, 768
    %v33 = vadd.s32 %v26, 896
    %v34 = vadd.s32 %v26, 1024
    %v35 = vadd.s32 %v26, 1152
    %v36 = vadd.s32 %v26, 1280
    %v37 = vadd.s32 %v26, 1408
    %v38 = vadd.s32 %v26, 1536
    %v39 = vadd.s32 %v26, 1664
    %v40 = vadd.s32 %v26, 1792
    %v41 = vadd.s32 %v26, 1920
    %v42 = vstv 0
    %v43 = vadd.s32 %v42, %v24
    %v44 = vmul.u32 %v43, 2048
    %v45 = vadd.s32 %v44, %v26
    %v46 = vadd.s32 %v44, %v27
    %v47 = vadd.s32 %v44, %v28
    %v48 = vadd.s32 %v44, %v29
    %v49 = vadd.s32 %v44, %v30
    %v50 = vadd.s32 %v44, %v31
    %v51 = vadd.s32 %v44, %v32
    %v52 = vadd.s32 %v44, %v33
    %v53 = vadd.s32 %v44, %v34
    %v54 = vadd.s32 %v44, %v35
    %v55 = vadd.s32 %v44, %v36
    %v56 = vadd.s32 %v44, %v37
    %v57 = vadd.s32 %v44, %v38
    %v58 = vadd.s32 %v44, %v39
    %v59 = vadd.s32 %v44, %v40
    %v60 = vadd.s32 %v44, %v41
    %v61 = vmul.u32 %v45, 2654435769
    %v62 = vmul.u32 %v46, 2654435769
    %v63 = vmul.u32 %v47, 2654435769
    %v64 = vmul.u32 %v48, 2654435769
    %v65 = vmul.u32 %v49, 2654435769
    %v66 = vmul.u32 %v50, 2654435769
    %v67 = vmul.u32 %v51, 2654435769
    %v68 = vmul.u32 %v52, 2654435769
    %v69 = vmul.u32 %v53, 2654435769
    %v70 = vmul.u32 %v54, 2654435769
    %v71 = vmul.u32 %v55, 2654435769
    %v72 = vmul.u32 %v56, 2654435769
    %v73 = vmul.u32 %v57, 2654435769
    %v74 = vmul.u32 %v58, 2654435769
    %v75 = vmul.u32 %v59, 2654435769
    %v76 = vmul.u32 %v60, 2654435769
    %s77 = sld [smem:[#allocation3]]
    %v78 = vstv %s77
    %v79 = vadd.s32 %v61, %v78
    %v80 = vadd.s32 %v62, %v78
    %v81 = vadd.s32 %v63, %v78
    %v82 = vadd.s32 %v64, %v78
    %v83 = vadd.s32 %v65, %v78
    %v84 = vadd.s32 %v66, %v78
    %v85 = vadd.s32 %v67, %v78
    %v86 = vadd.s32 %v68, %v78
    %v87 = vadd.s32 %v69, %v78
    %v88 = vadd.s32 %v70, %v78
    %v89 = vadd.s32 %v71, %v78
    %v90 = vadd.s32 %v72, %v78
    %v91 = vadd.s32 %v73, %v78
    %v92 = vadd.s32 %v74, %v78
    %v93 = vadd.s32 %v75, %v78
    %v94 = vadd.s32 %v76, %v78
    %v95 = vshrl.u32 %v79, 16
    %v96 = vshrl.u32 %v80, 16
    %v97 = vshrl.u32 %v81, 16
    %v98 = vshrl.u32 %v82, 16
    %v99 = vshrl.u32 %v83, 16
    %v100 = vshrl.u32 %v84, 16
    %v101 = vshrl.u32 %v85, 16
    %v102 = vshrl.u32 %v86, 16
    %v103 = vshrl.u32 %v87, 16
    %v104 = vshrl.u32 %v88, 16
    %v105 = vshrl.u32 %v89, 16
    %v106 = vshrl.u32 %v90, 16
    %v107 = vshrl.u32 %v91, 16
    %v108 = vshrl.u32 %v92, 16
    %v109 = vshrl.u32 %v93, 16
    %v110 = vshrl.u32 %v94, 16
    %v111 = vxor.u32 %v79, %v95
    %v112 = vxor.u32 %v80, %v96
    %v113 = vxor.u32 %v81, %v97
    %v114 = vxor.u32 %v82, %v98
    %v115 = vxor.u32 %v83, %v99
    %v116 = vxor.u32 %v84, %v100
    %v117 = vxor.u32 %v85, %v101
    %v118 = vxor.u32 %v86, %v102
    %v119 = vxor.u32 %v87, %v103
    %v120 = vxor.u32 %v88, %v104
    %v121 = vxor.u32 %v89, %v105
    %v122 = vxor.u32 %v90, %v106
    %v123 = vxor.u32 %v91, %v107
    %v124 = vxor.u32 %v92, %v108
    %v125 = vxor.u32 %v93, %v109
    %v126 = vxor.u32 %v94, %v110
    %v127 = vmul.u32 %v111, 569420461
    %v128 = vmul.u32 %v112, 569420461
    %v129 = vmul.u32 %v113, 569420461
    %v130 = vmul.u32 %v114, 569420461
    %v131 = vmul.u32 %v115, 569420461
    %v132 = vmul.u32 %v116, 569420461
    %v133 = vmul.u32 %v117, 569420461
    %v134 = vmul.u32 %v118, 569420461
    %v135 = vmul.u32 %v119, 569420461
    %v136 = vmul.u32 %v120, 569420461
    %v137 = vmul.u32 %v121, 569420461
    %v138 = vmul.u32 %v122, 569420461
    %v139 = vmul.u32 %v123, 569420461
    %v140 = vmul.u32 %v124, 569420461
    %v141 = vmul.u32 %v125, 569420461
    %v142 = vmul.u32 %v126, 569420461
    %v143 = vshrl.u32 %v127, 15
    %v144 = vshrl.u32 %v128, 15
    %v145 = vshrl.u32 %v129, 15
    %v146 = vshrl.u32 %v130, 15
    %v147 = vshrl.u32 %v131, 15
    %v148 = vshrl.u32 %v132, 15
    %v149 = vshrl.u32 %v133, 15
    %v150 = vshrl.u32 %v134, 15
    %v151 = vshrl.u32 %v135, 15
    %v152 = vshrl.u32 %v136, 15
    %v153 = vshrl.u32 %v137, 15
    %v154 = vshrl.u32 %v138, 15
    %v155 = vshrl.u32 %v139, 15
    %v156 = vshrl.u32 %v140, 15
    %v157 = vshrl.u32 %v141, 15
    %v158 = vshrl.u32 %v142, 15
    %v159 = vxor.u32 %v127, %v143
    %v160 = vxor.u32 %v128, %v144
    %v161 = vxor.u32 %v129, %v145
    %v162 = vxor.u32 %v130, %v146
    %v163 = vxor.u32 %v131, %v147
    %v164 = vxor.u32 %v132, %v148
    %v165 = vxor.u32 %v133, %v149
    %v166 = vxor.u32 %v134, %v150
    %v167 = vxor.u32 %v135, %v151
    %v168 = vxor.u32 %v136, %v152
    %v169 = vxor.u32 %v137, %v153
    %v170 = vxor.u32 %v138, %v154
    %v171 = vxor.u32 %v139, %v155
    %v172 = vxor.u32 %v140, %v156
    %v173 = vxor.u32 %v141, %v157
    %v174 = vxor.u32 %v142, %v158
    %v175 = vmul.u32 %v159, 1935289751
    %v176 = vmul.u32 %v160, 1935289751
    %v177 = vmul.u32 %v161, 1935289751
    %v178 = vmul.u32 %v162, 1935289751
    %v179 = vmul.u32 %v163, 1935289751
    %v180 = vmul.u32 %v164, 1935289751
    %v181 = vmul.u32 %v165, 1935289751
    %v182 = vmul.u32 %v166, 1935289751
    %v183 = vmul.u32 %v167, 1935289751
    %v184 = vmul.u32 %v168, 1935289751
    %v185 = vmul.u32 %v169, 1935289751
    %v186 = vmul.u32 %v170, 1935289751
    %v187 = vmul.u32 %v171, 1935289751
    %v188 = vmul.u32 %v172, 1935289751
    %v189 = vmul.u32 %v173, 1935289751
    %v190 = vmul.u32 %v174, 1935289751
    %v191 = vshrl.u32 %v175, 15
    %v192 = vshrl.u32 %v176, 15
    %v193 = vshrl.u32 %v177, 15
    %v194 = vshrl.u32 %v178, 15
    %v195 = vshrl.u32 %v179, 15
    %v196 = vshrl.u32 %v180, 15
    %v197 = vshrl.u32 %v181, 15
    %v198 = vshrl.u32 %v182, 15
    %v199 = vshrl.u32 %v183, 15
    %v200 = vshrl.u32 %v184, 15
    %v201 = vshrl.u32 %v185, 15
    %v202 = vshrl.u32 %v186, 15
    %v203 = vshrl.u32 %v187, 15
    %v204 = vshrl.u32 %v188, 15
    %v205 = vshrl.u32 %v189, 15
    %v206 = vshrl.u32 %v190, 15
    %v207 = vxor.u32 %v175, %v191
    %v208 = vxor.u32 %v176, %v192
    %v209 = vxor.u32 %v177, %v193
    %v210 = vxor.u32 %v178, %v194
    %v211 = vxor.u32 %v179, %v195
    %v212 = vxor.u32 %v180, %v196
    %v213 = vxor.u32 %v181, %v197
    %v214 = vxor.u32 %v182, %v198
    %v215 = vxor.u32 %v183, %v199
    %v216 = vxor.u32 %v184, %v200
    %v217 = vxor.u32 %v185, %v201
    %v218 = vxor.u32 %v186, %v202
    %v219 = vxor.u32 %v187, %v203
    %v220 = vxor.u32 %v188, %v204
    %v221 = vxor.u32 %v189, %v205
    %v222 = vxor.u32 %v190, %v206
    %vm223 = vcmp.ge.u32.totalorder %v207, 429497
    %vm224 = vcmp.ge.u32.totalorder %v208, 429497
    %vm225 = vcmp.ge.u32.totalorder %v209, 429497
    %vm226 = vcmp.ge.u32.totalorder %v210, 429497
    %vm227 = vcmp.ge.u32.totalorder %v211, 429497
    %vm228 = vcmp.ge.u32.totalorder %v212, 429497
    %vm229 = vcmp.ge.u32.totalorder %v213, 429497
    %vm230 = vcmp.ge.u32.totalorder %v214, 429497
    %vm231 = vcmp.ge.u32.totalorder %v215, 429497
    %vm232 = vcmp.ge.u32.totalorder %v216, 429497
    %vm233 = vcmp.ge.u32.totalorder %v217, 429497
    %vm234 = vcmp.ge.u32.totalorder %v218, 429497
    %vm235 = vcmp.ge.u32.totalorder %v219, 429497
    %vm236 = vcmp.ge.u32.totalorder %v220, 429497
    %vm237 = vcmp.ge.u32.totalorder %v221, 429497
    %vm238 = vcmp.ge.u32.totalorder %v222, 429497
    %v239 = vld [vmem:[#allocation4] sm:$0xff]
    %v240 = vld [vmem:[#allocation4 + $0x8] sm:$0xff]
    %v241 = vmul.f32 %v239, 1.0001
    %v242 = vmul.f32 %v240, 1.0001
    %v245 = vlaneseq
    %v246 = vshrl.u32 %v245, 7
    %v247 = vsub.s32 0, %v246
    %v248 = vrot.slane %v241, %v247
    %v249 = vlaneseq
    %v250 = vshrl.u32 %v249, 7
    %v251 = vsub.s32 1, %v250
    %v252 = vrot.slane %v241, %v251
    %v253 = vlaneseq
    %v254 = vshrl.u32 %v253, 7
    %v255 = vsub.s32 2, %v254
    %v256 = vrot.slane %v241, %v255
    %v257 = vlaneseq
    %v258 = vshrl.u32 %v257, 7
    %v259 = vsub.s32 3, %v258
    %v260 = vrot.slane %v241, %v259
    %v261 = vlaneseq
    %v262 = vshrl.u32 %v261, 7
    %v263 = vsub.s32 4, %v262
    %v264 = vrot.slane %v241, %v263
    %v265 = vlaneseq
    %v266 = vshrl.u32 %v265, 7
    %v267 = vsub.s32 5, %v266
    %v268 = vrot.slane %v241, %v267
    %v269 = vlaneseq
    %v270 = vshrl.u32 %v269, 7
    %v271 = vsub.s32 6, %v270
    %v272 = vrot.slane %v241, %v271
    %v273 = vlaneseq
    %v274 = vshrl.u32 %v273, 7
    %v275 = vsub.s32 7, %v274
    %v276 = vrot.slane %v241, %v275
    %v277 = vlaneseq
    %v278 = vshrl.u32 %v277, 7
    %v279 = vsub.s32 0, %v278
    %v280 = vrot.slane %v242, %v279
    %v281 = vlaneseq
    %v282 = vshrl.u32 %v281, 7
    %v283 = vsub.s32 1, %v282
    %v284 = vrot.slane %v242, %v283
    %v285 = vlaneseq
    %v286 = vshrl.u32 %v285, 7
    %v287 = vsub.s32 2, %v286
    %v288 = vrot.slane %v242, %v287
    %v289 = vlaneseq
    %v290 = vshrl.u32 %v289, 7
    %v291 = vsub.s32 3, %v290
    %v292 = vrot.slane %v242, %v291
    %v293 = vlaneseq
    %v294 = vshrl.u32 %v293, 7
    %v295 = vsub.s32 4, %v294
    %v296 = vrot.slane %v242, %v295
    %v297 = vlaneseq
    %v298 = vshrl.u32 %v297, 7
    %v299 = vsub.s32 5, %v298
    %v300 = vrot.slane %v242, %v299
    %v301 = vlaneseq
    %v302 = vshrl.u32 %v301, 7
    %v303 = vsub.s32 6, %v302
    %v304 = vrot.slane %v242, %v303
    %v305 = vlaneseq
    %v306 = vshrl.u32 %v305, 7
    %v307 = vsub.s32 7, %v306
    %v308 = vrot.slane %v242, %v307
    %v325 = vsel %vm223, %v248, 0.0
    %v326 = vsel %vm224, %v252, 0.0
    %v327 = vsel %vm225, %v256, 0.0
    %v328 = vsel %vm226, %v260, 0.0
    %v329 = vsel %vm227, %v264, 0.0
    %v330 = vsel %vm228, %v268, 0.0
    %v331 = vsel %vm229, %v272, 0.0
    %v332 = vsel %vm230, %v276, 0.0
    %v333 = vsel %vm231, %v280, 0.0
    %v334 = vsel %vm232, %v284, 0.0
    %v335 = vsel %vm233, %v288, 0.0
    %v336 = vsel %vm234, %v292, 0.0
    %v337 = vsel %vm235, %v296, 0.0
    %v338 = vsel %vm236, %v300, 0.0
    %v339 = vsel %vm237, %v304, 0.0
    %v340 = vsel %vm238, %v308, 0.0
    %v357 = vcombine.low %v325, %v326
    %v358 = vcombine.low %v327, %v328
    %v359 = vcombine.low %v329, %v330
    %v360 = vcombine.low %v331, %v332
    %v362 = vunpack.c.l.s4 1966171168
    %v363 = vunpack.c.0.s8 %v362
    %v364 = vlaneseq
    %v365 = vshrl.u32 %v364, 7
    %v366 = vsub.s32 %v363, %v365
    %v367 = vrot.slane %v357, %v366
    %v369 = vunpack.c.l.s4 1966171168
    %v370 = vunpack.c.0.s8 %v369
    %v371 = vlaneseq
    %v372 = vshrl.u32 %v371, 7
    %v373 = vsub.s32 %v370, %v372
    %v374 = vrot.slane %v358, %v373
    %v376 = vunpack.c.l.s4 1966171168
    %v377 = vunpack.c.0.s8 %v376
    %v378 = vlaneseq
    %v379 = vshrl.u32 %v378, 7
    %v380 = vsub.s32 %v377, %v379
    %v381 = vrot.slane %v359, %v380
    %v383 = vunpack.c.l.s4 1966171168
    %v384 = vunpack.c.0.s8 %v383
    %v385 = vlaneseq
    %v386 = vshrl.u32 %v385, 7
    %v387 = vsub.s32 %v384, %v386
    %v388 = vrot.slane %v360, %v387
    %v389 = vcombine.low %v367, %v374
    %v390 = vcombine.low %v381, %v388
    %v392 = vunpack.c.l.s4 1966171168
    %v393 = vunpack.c.0.s8 %v392
    %v394 = vlaneseq
    %v395 = vshrl.u32 %v394, 7
    %v396 = vsub.s32 %v393, %v395
    %v397 = vrot.slane %v389, %v396
    %v399 = vunpack.c.l.s4 1966171168
    %v400 = vunpack.c.0.s8 %v399
    %v401 = vlaneseq
    %v402 = vshrl.u32 %v401, 7
    %v403 = vsub.s32 %v400, %v402
    %v404 = vrot.slane %v390, %v403
    %v405 = vcombine.low %v397, %v404
    %v406 = vcombine.low %v333, %v334
    %v407 = vcombine.low %v335, %v336
    %v408 = vcombine.low %v337, %v338
    %v409 = vcombine.low %v339, %v340
    %v411 = vunpack.c.l.s4 1966171168
    %v412 = vunpack.c.0.s8 %v411
    %v413 = vlaneseq
    %v414 = vshrl.u32 %v413, 7
    %v415 = vsub.s32 %v412, %v414
    %v416 = vrot.slane %v406, %v415
    %v418 = vunpack.c.l.s4 1966171168
    %v419 = vunpack.c.0.s8 %v418
    %v420 = vlaneseq
    %v421 = vshrl.u32 %v420, 7
    %v422 = vsub.s32 %v419, %v421
    %v423 = vrot.slane %v407, %v422
    %v425 = vunpack.c.l.s4 1966171168
    %v426 = vunpack.c.0.s8 %v425
    %v427 = vlaneseq
    %v428 = vshrl.u32 %v427, 7
    %v429 = vsub.s32 %v426, %v428
    %v430 = vrot.slane %v408, %v429
    %v432 = vunpack.c.l.s4 1966171168
    %v433 = vunpack.c.0.s8 %v432
    %v434 = vlaneseq
    %v435 = vshrl.u32 %v434, 7
    %v436 = vsub.s32 %v433, %v435
    %v437 = vrot.slane %v409, %v436
    %v438 = vcombine.low %v416, %v423
    %v439 = vcombine.low %v430, %v437
    %v441 = vunpack.c.l.s4 1966171168
    %v442 = vunpack.c.0.s8 %v441
    %v443 = vlaneseq
    %v444 = vshrl.u32 %v443, 7
    %v445 = vsub.s32 %v442, %v444
    %v446 = vrot.slane %v438, %v445
    %v448 = vunpack.c.l.s4 1966171168
    %v449 = vunpack.c.0.s8 %v448
    %v450 = vlaneseq
    %v451 = vshrl.u32 %v450, 7
    %v452 = vsub.s32 %v449, %v451
    %v453 = vrot.slane %v439, %v452
    %v454 = vcombine.low %v446, %v453
    %457 = vst [vmem:[#allocation7] sm:$0xff] %v405
    %458 = vst [vmem:[#allocation7 + $0x8] sm:$0xff] %v454
    // Predicated region
    $region10: #{tpu_custom_call.1} parent=1 // pred_check
      _
    $region11: #{tpu_custom_call.1} parent=1 // pred_check_branch
      %460 = sbr.rel (0) target = $region13
    $region12: #{tpu_custom_call.1} parent=1 // pred_region
      %s462 = ssub.s32 256, 256
      %463 = vsyncadd [#allocation6], %s462
      %s465 = sshll.u32 [#allocation7], 4
      %s466 = int_to_ptr.vmem [resolvable:$true] %s465
      %468 = dma.vmem_to_hbm [thread:$0]  %s466, 256, %s2, [#allocation6]
    $region13: #{tpu_custom_call.1} parent=1 // pred_fallthru
      _
    // Predicated region
    $region14: #{tpu_custom_call.1} parent=1 // pred_check
      _
    $region15: #{tpu_custom_call.1} parent=1 // pred_check_branch
      %470 = sbr.rel (0) target = $region17
    $region16: #{tpu_custom_call.1} parent=1 // pred_region
      %471 = dma.done [#allocation6], 256
    $region17: #{tpu_custom_call.1} parent=1 // pred_fallthru
      _
    %472 = vsyncpa [#allocation5], 1
    %473 = vsyncpa [#allocation6], 1

</llo_original>
